<compile_context>
chip_gen: v7x
topology: tpu7x:2x2x1
jax: 0.10.0
libtpu: 0.0.40
codegen_flags: <defaults>
</compile_context>

<pallas_src>
import jax
import jax.numpy as jnp
from jax.experimental import pallas as pl
from jax.experimental.pallas import tpu as pltpu

BN_EPS = 1e-5


def mlp_kernel(x_ref, w1_ref, gb_ref, w2_ref, b2_ref, o_ref):
    # Everything fits in VMEM at these sizes -> single kernel body, no grid.

    # Linear 1 (MXU), f32 accumulation.  b1 omitted: it cancels exactly under
    # the train-mode BatchNorm mean subtraction below.
    h = jnp.dot(x_ref[...], w1_ref[...], preferred_element_type=jnp.float32)

    # BatchNorm1d, training-mode (biased batch variance, eps=1e-5), fused with
    # the affine transform into a single scale/shift pass over [B, H].
    m = jnp.mean(h, axis=0, keepdims=True)
    m2 = jnp.mean(h * h, axis=0, keepdims=True)
    var = jnp.maximum(m2 - m * m, 0.0)          # one-pass variance, clamped

    gb = gb_ref[...]                            # (2, H): row 0 = gamma, row 1 = beta
    gamma = gb[0:1, :]
    beta = gb[1:2, :]

    scale = gamma * jax.lax.rsqrt(var + BN_EPS)  # rsqrt -> EUP (free slot)
    shift = beta - m * scale

    # BN affine + ReLU in one VPU pass.
    h = jnp.maximum(h * scale + shift, 0.0)

    # Linear 2 (MXU).  Cast activations to the weight dtype so that when the
    # wrapper supplies bf16 weights (v6e/v7x) both operands are MXU-native.
    out = jnp.dot(h.astype(w2_ref.dtype), w2_ref[...],
                  preferred_element_type=jnp.float32) + b2_ref[...]
    o_ref[...] = out.astype(o_ref.dtype)


def mlp_forward(x, w1, b1, gamma, beta, w2, b2, *, matmul_dtype=None):
    """Forward pass of MLP(dim, projection_size, hidden_size).

    Weights are stored transposed vs. PyTorch (as [in, out]).  `b1` is accepted
    for API parity with nn.Linear but is mathematically dead under train-mode
    BatchNorm1d and is not passed to the kernel.
    """
    del b1  # cancels exactly in train-mode BN; re-add if BN uses running stats

    B, D = x.shape
    H = w1.shape[1]
    P = w2.shape[1]
    out_dtype = x.dtype

    # Optional bf16 MXU operands (recommended on v6e/v7x); BN math stays f32.
    if matmul_dtype is not None:
        x = x.astype(matmul_dtype)
        w1 = w1.astype(matmul_dtype)
        w2 = w2.astype(matmul_dtype)

    # Pack the BN affine params into one (2, H) operand -> one DMA, not two.
    gb = jnp.stack([gamma, beta]).astype(jnp.float32)

    # Lane-dense output store: pad the projection dim up to a multiple of 128
    # (zero-padded weight columns / bias) and slice the real columns outside.
    P_pad = ((P + 127) // 128) * 128
    if P_pad != P:
        w2 = jnp.pad(w2, ((0, 0), (0, P_pad - P)))
        b2 = jnp.pad(b2, (0, P_pad - P))
    b2_2d = b2.reshape(1, P_pad).astype(jnp.float32)

    vmem = pl.BlockSpec(memory_space=pltpu.MemorySpace.VMEM)

    out = pl.pallas_call(
        mlp_kernel,
        out_shape=jax.ShapeDtypeStruct((B, P_pad), out_dtype),
        in_specs=[vmem, vmem, vmem, vmem, vmem],
        out_specs=vmem,
    )(x, w1, gb, w2, b2_2d)

    return out[:, :P] if P_pad != P else out


def reference_forward(x, w1, b1, gamma, beta, w2, b2):
    h = x @ w1 + b1
    mean = jnp.mean(h, axis=0, keepdims=True)
    var = jnp.mean((h - mean) ** 2, axis=0, keepdims=True)
    h = (h - mean) / jnp.sqrt(var + BN_EPS) * gamma + beta
    h = jnp.maximum(h, 0.0)
    return h @ w2 + b2


if __name__ == "__main__":
    # Small shapes consistent with MLP(dim, projection_size, hidden_size):
    # batch=8, dim=32, hidden=64, projection=16.
    B, DIM, HIDDEN, PROJ = 8, 32, 64, 16

    key = jax.random.PRNGKey(0)
    kx, k1, kb1, k2, kb2 = jax.random.split(key, 5)

    x = jax.random.normal(kx, (B, DIM), dtype=jnp.float32)

    lim1 = 1.0 / (DIM ** 0.5)
    w1 = jax.random.uniform(k1, (DIM, HIDDEN), minval=-lim1, maxval=lim1, dtype=jnp.float32)
    b1 = jax.random.uniform(kb1, (HIDDEN,), minval=-lim1, maxval=lim1, dtype=jnp.float32)

    gamma = jnp.ones((HIDDEN,), dtype=jnp.float32)   # BatchNorm1d weight init
    beta = jnp.zeros((HIDDEN,), dtype=jnp.float32)   # BatchNorm1d bias init

    lim2 = 1.0 / (HIDDEN ** 0.5)
    w2 = jax.random.uniform(k2, (HIDDEN, PROJ), minval=-lim2, maxval=lim2, dtype=jnp.float32)
    b2 = jax.random.uniform(kb2, (PROJ,), minval=-lim2, maxval=lim2, dtype=jnp.float32)

    # f32 path preserves the PyTorch module's numerics exactly; pass
    # matmul_dtype=jnp.bfloat16 on v6e/v7x for MXU-native operands.
    out = mlp_forward(x, w1, b1, gamma, beta, w2, b2)
    out = jax.block_until_ready(out)

    ref = reference_forward(x, w1, b1, gamma, beta, w2, b2)
    assert out.shape == (B, PROJ)
    assert jnp.allclose(out, ref, atol=1e-4, rtol=1e-4)

    print("KERNEL_OK")
</pallas_src>

<mosaic_0001>
module attributes {stable_mosaic.version = 11 : i64} {
  func.func @mlp_kernel(%arg0: memref<8x32xf32, #tpu.memory_space<vmem>>, %arg1: memref<32x64xf32, #tpu.memory_space<vmem>>, %arg2: memref<2x64xf32, #tpu.memory_space<vmem>>, %arg3: memref<64x128xf32, #tpu.memory_space<vmem>>, %arg4: memref<1x128xf32, #tpu.memory_space<vmem>>, %arg5: memref<8x128xf32, #tpu.memory_space<vmem>>) attributes {dimension_semantics = [], scalar_prefetch = 0 : i64, scratch_operands = 0 : i64, tpu.core_type = #tpu.core_type<tc>} {
    %c0 = arith.constant 0 : index
    %c0_0 = arith.constant 0 : index
    %0 = vector.load %arg0[%c0, %c0_0] : memref<8x32xf32, #tpu.memory_space<vmem>>, vector<8x32xf32>
    %c0_1 = arith.constant 0 : index
    %c0_2 = arith.constant 0 : index
    %1 = vector.load %arg1[%c0_1, %c0_2] : memref<32x64xf32, #tpu.memory_space<vmem>>, vector<32x64xf32>
    %cst = arith.constant dense<0.000000e+00> : vector<8x64xf32>
    %2 = tpu.matmul %0, %1, %cst {dimension_numbers = #tpu.dot_dimension_numbers<[1], [0], [0], [1], [0, 0, 1, 1], [], []>} : vector<8x32xf32>, vector<32x64xf32>, vector<8x64xf32> -> vector<8x64xf32>
    %cst_3 = arith.constant dense<0.000000e+00> : vector<64xf32>
    %3 = vector.multi_reduction <add>, %2, %cst_3 [0] : vector<8x64xf32> to vector<64xf32>
    %4 = vector.shape_cast %3 : vector<64xf32> to vector<1x64xf32>
    %cst_4 = arith.constant 8.000000e+00 : f32
    %5 = vector.broadcast %cst_4 : f32 to vector<1x64xf32>
    %6 = arith.divf %4, %5 : vector<1x64xf32>
    %7 = arith.mulf %2, %2 : vector<8x64xf32>
    %cst_5 = arith.constant dense<0.000000e+00> : vector<64xf32>
    %8 = vector.multi_reduction <add>, %7, %cst_5 [0] : vector<8x64xf32> to vector<64xf32>
    %9 = vector.shape_cast %8 : vector<64xf32> to vector<1x64xf32>
    %cst_6 = arith.constant 8.000000e+00 : f32
    %10 = vector.broadcast %cst_6 : f32 to vector<1x64xf32>
    %11 = arith.divf %9, %10 : vector<1x64xf32>
    %12 = arith.mulf %6, %6 : vector<1x64xf32>
    %13 = arith.subf %11, %12 : vector<1x64xf32>
    %cst_7 = arith.constant 0.000000e+00 : f32
    %14 = vector.broadcast %cst_7 : f32 to vector<1x64xf32>
    %15 = arith.maximumf %13, %14 : vector<1x64xf32>
    %c0_8 = arith.constant 0 : index
    %c0_9 = arith.constant 0 : index
    %16 = vector.load %arg2[%c0_8, %c0_9] : memref<2x64xf32, #tpu.memory_space<vmem>>, vector<2x64xf32>
    %17 = vector.extract_strided_slice %16 {offsets = [0, 0], sizes = [1, 64], strides = [1, 1]} : vector<2x64xf32> to vector<1x64xf32>
    %18 = vector.extract_strided_slice %16 {offsets = [1, 0], sizes = [1, 64], strides = [1, 1]} : vector<2x64xf32> to vector<1x64xf32>
    %cst_10 = arith.constant 9.99999974E-6 : f32
    %19 = vector.broadcast %cst_10 : f32 to vector<1x64xf32>
    %20 = arith.addf %15, %19 : vector<1x64xf32>
    %21 = math.rsqrt %20 : vector<1x64xf32>
    %22 = arith.mulf %17, %21 : vector<1x64xf32>
    %23 = arith.mulf %6, %22 : vector<1x64xf32>
    %24 = arith.subf %18, %23 : vector<1x64xf32>
    %25 = vector.broadcast %22 : vector<1x64xf32> to vector<8x64xf32>
    %26 = arith.mulf %2, %25 : vector<8x64xf32>
    %27 = vector.broadcast %24 : vector<1x64xf32> to vector<8x64xf32>
    %28 = arith.addf %26, %27 : vector<8x64xf32>
    %cst_11 = arith.constant 0.000000e+00 : f32
    %29 = vector.broadcast %cst_11 : f32 to vector<8x64xf32>
    %30 = arith.maximumf %28, %29 : vector<8x64xf32>
    %c0_12 = arith.constant 0 : index
    %c0_13 = arith.constant 0 : index
    %31 = vector.load %arg3[%c0_12, %c0_13] : memref<64x128xf32, #tpu.memory_space<vmem>>, vector<64x128xf32>
    %cst_14 = arith.constant dense<0.000000e+00> : vector<8x128xf32>
    %32 = tpu.matmul %30, %31, %cst_14 {dimension_numbers = #tpu.dot_dimension_numbers<[1], [0], [0], [1], [0, 0, 1, 1], [], []>} : vector<8x64xf32>, vector<64x128xf32>, vector<8x128xf32> -> vector<8x128xf32>
    %c0_15 = arith.constant 0 : index
    %c0_16 = arith.constant 0 : index
    %33 = vector.load %arg4[%c0_15, %c0_16] : memref<1x128xf32, #tpu.memory_space<vmem>>, vector<1x128xf32>
    %34 = vector.broadcast %33 : vector<1x128xf32> to vector<8x128xf32>
    %35 = arith.addf %32, %34 : vector<8x128xf32>
    %c0_17 = arith.constant 0 : index
    %c0_18 = arith.constant 0 : index
    %36 = vector.load %arg5[%c0_17, %c0_18] : memref<8x128xf32, #tpu.memory_space<vmem>>, vector<8x128xf32>
    tpu.vector_store %arg5[%c0_17, %c0_18], %35 {strides = array<i32>} : memref<8x128xf32, #tpu.memory_space<vmem>>, vector<8x128xf32>,
    return
  }
}

</mosaic_0001>

<llo_original>
// kernel: tpu_custom_call.1
$region0: #{tpu_custom_call.1}
  #allocation0 [shape = 'u32[]', space=smem, size = 0x4, offset = 0x4, fixed_abs, tag = 'smem constant byte address 0x4 - core index']
  #allocation1 [shape = 'u32[144,128]{1,0:T(1,128)}', space=vmem, size = 0x12000, scoped, tag = 'internal scratch']
  %s0 = inlined_call_operand.hbm [shape: f32[8,32], index: 0, kind: input, shape index: {}]
  %s1 = inlined_call_operand.hbm [shape: f32[32,64], index: 1, kind: input, shape index: {}]
  %s2 = inlined_call_operand.vmem [shape: f32[2,64], index: 2, kind: input, shape index: {}]
  %s3 = inlined_call_operand.hbm [shape: f32[64,128], index: 3, kind: input, shape index: {}]
  %s4 = inlined_call_operand.vmem [shape: f32[1,128], index: 4, kind: input, shape index: {}]
  %s5 = inlined_call_operand.hbm [shape: f32[8,128], index: 5, kind: output, shape index: {}]
  %s6 = sld [smem:[#allocation0]]
  $region42: #{tpu_custom_call.1} parent=0
    _
  %s8 = ssub.s32 1, %s6
  %s9 = scalar_select 0, %s8, %s6
  $region1: #{tpu_custom_call.1} parent=0
    #allocation2 [shape = 'u8[4096]{0}', space=vmem, size = 0x1000, scoped, tag = 'input window, operand 0, single buffered']
    #allocation3 [shape = 's32[1]{0}', space=sflag, size = 0x4, scoped, tag = 'scoped memory for tpu_custom_call.1']
    #allocation4 [shape = 's32[1]{0}', space=sflag, size = 0x4, scoped, tag = 'scoped memory for tpu_custom_call.1']
    #allocation5 [shape = 'u8[16384]{0}', space=vmem, size = 0x4000, scoped, tag = 'input window, operand 1, single buffered']
    #allocation6 [shape = 's32[1]{0}', space=sflag, size = 0x4, scoped, tag = 'scoped memory for tpu_custom_call.1']
    #allocation7 [shape = 'u8[32768]{0}', space=vmem, size = 0x8000, scoped, tag = 'input window, operand 3, single buffered']
    #allocation8 [shape = 'u8[4096]{0}', space=vmem, size = 0x1000, scoped, tag = 'output window, operand 0, single buffered']
    %10 = vsyncpa [#allocation3], 0
    %11 = vsyncpa [#allocation6], 0
    %12 = vsyncpa [#allocation4], 0
    // Predicated region
    $region2: #{tpu_custom_call.1} parent=1 // pred_check
      _
    $region3: #{tpu_custom_call.1} parent=1 // pred_check_branch
      %14 = sbr.rel (0) target = $region5
    $region4: #{tpu_custom_call.1} parent=1 // pred_region
      %s16 = ssub.s32 128, 128
      %17 = vsyncadd [#allocation3], %s16
      %s19 = sshll.u32 [#allocation2], 4
      %s20 = int_to_ptr.vmem [resolvable:$true] %s19
      %22 = dma.hbm_to_vmem [thread:$0]  %s0, 128, %s20, [#allocation3]
    $region5: #{tpu_custom_call.1} parent=1 // pred_fallthru
      _
    // Predicated region
    $region6: #{tpu_custom_call.1} parent=1 // pred_check
      _
    $region7: #{tpu_custom_call.1} parent=1 // pred_check_branch
      %24 = sbr.rel (0) target = $region9
    $region8: #{tpu_custom_call.1} parent=1 // pred_region
      %s26 = ssub.s32 512, 512
      %27 = vsyncadd [#allocation6], %s26
      %s28 = sshll.u32 [#allocation5], 4
      %s29 = int_to_ptr.vmem [resolvable:$true] %s28
      %34 = dma.hbm_to_vmem [thread:$0]  %s1, 512, %s29, [#allocation6], 128, 128, 8
    $region9: #{tpu_custom_call.1} parent=1 // pred_fallthru
      _
    // Predicated region
    $region10: #{tpu_custom_call.1} parent=1 // pred_check
      _
    $region11: #{tpu_custom_call.1} parent=1 // pred_check_branch
      %36 = sbr.rel (0) target = $region13
    $region12: #{tpu_custom_call.1} parent=1 // pred_region
      _
    $region13: #{tpu_custom_call.1} parent=1 // pred_fallthru
      _
    // Predicated region
    $region14: #{tpu_custom_call.1} parent=1 // pred_check
      _
    $region15: #{tpu_custom_call.1} parent=1 // pred_check_branch
      %38 = sbr.rel (0) target = $region17
    $region16: #{tpu_custom_call.1} parent=1 // pred_region
      %s40 = ssub.s32 1024, 1024
      %41 = vsyncadd [#allocation6], %s40
      %s42 = sshll.u32 [#allocation7], 4
      %s43 = int_to_ptr.vmem [resolvable:$true] %s42
      %48 = dma.hbm_to_vmem [thread:$0]  %s3, 1024, %s43, [#allocation6], 128, 128, 8
    $region17: #{tpu_custom_call.1} parent=1 // pred_fallthru
      _
    // Predicated region
    $region18: #{tpu_custom_call.1} parent=1 // pred_check
      _
    $region19: #{tpu_custom_call.1} parent=1 // pred_check_branch
      %50 = sbr.rel (0) target = $region21
    $region20: #{tpu_custom_call.1} parent=1 // pred_region
      _
    $region21: #{tpu_custom_call.1} parent=1 // pred_fallthru
      _
    // Predicated region
    $region22: #{tpu_custom_call.1} parent=1 // pred_check
      _
    $region23: #{tpu_custom_call.1} parent=1 // pred_check_branch
      %52 = sbr.rel (0) target = $region25
    $region24: #{tpu_custom_call.1} parent=1 // pred_region
      %53 = dma.done [#allocation3], 128
    $region25: #{tpu_custom_call.1} parent=1 // pred_fallthru
      _
    // Predicated region
    $region26: #{tpu_custom_call.1} parent=1 // pred_check
      _
    $region27: #{tpu_custom_call.1} parent=1 // pred_check_branch
      %55 = sbr.rel (0) target = $region29
    $region28: #{tpu_custom_call.1} parent=1 // pred_region
      %56 = dma.done [#allocation6], 512
    $region29: #{tpu_custom_call.1} parent=1 // pred_fallthru
      _
    // Predicated region
    $region30: #{tpu_custom_call.1} parent=1 // pred_check
      _
    $region31: #{tpu_custom_call.1} parent=1 // pred_check_branch
      %58 = sbr.rel (0) target = $region33
    $region32: #{tpu_custom_call.1} parent=1 // pred_region
      %59 = dma.done [#allocation6], 1024
    $region33: #{tpu_custom_call.1} parent=1 // pred_fallthru
      _
    %v60 = vld [vmem:[#allocation2] sm:$0xff]
    %v61 = vld [vmem:[#allocation5] sm:$0xff]
    %v62 = vld [vmem:[#allocation5 + $0x8] sm:$0xff]
    %v63 = vld [vmem:[#allocation5 + $0x10] sm:$0xff]
    %v64 = vld [vmem:[#allocation5 + $0x18] sm:$0xff]
    %vm65 = vcmask 261120
    %v67 = vsel %vm65, %v60, 0
    %69 = vmatprep.subr.mxu0 0.0
    %70 = vmatpush1.msra.mxu0 %v61
    %71 = vmatprep.subr.mxu0 0.0
    %72 = vmatpush1.msra.mxu0 %v62
    %73 = vmatprep.subr.mxu0 0.0
    %74 = vmatpush1.msra.mxu0 %v63
    %75 = vmatprep.subr.mxu0 0.0
    %76 = vmatpush1.msra.mxu0 %v64
    %77 = vmatprep.subr.mxu0 0.0
    %78 = vmatpush1.msra.mxu0 0.0
    %79 = vmatprep.subr.mxu0 0.0
    %80 = vmatpush1.msra.mxu0 0.0
    %81 = vmatprep.subr.mxu0 0.0
    %82 = vmatpush1.msra.mxu0 0.0
    %83 = vmatprep.subr.mxu0 0.0
    %84 = vmatpush1.msra.mxu0 0.0
    %85 = vmatprep.subr.mxu0 0.0
    %86 = vmatpush1.msra.mxu0 0.0
    %87 = vmatprep.subr.mxu0 0.0
    %88 = vmatpush1.msra.mxu0 0.0
    %89 = vmatprep.subr.mxu0 0.0
    %90 = vmatpush1.msra.mxu0 0.0
    %91 = vmatprep.subr.mxu0 0.0
    %92 = vmatpush1.msra.mxu0 0.0
    %93 = vmatprep.subr.mxu0 0.0
    %94 = vmatpush1.msra.mxu0 0.0
    %95 = vmatprep.subr.mxu0 0.0
    %96 = vmatpush1.msra.mxu0 0.0
    %97 = vmatprep.subr.mxu0 0.0
    %98 = vmatpush1.msra.mxu0 0.0
    %99 = vmatprep.subr.mxu0 0.0
    %100 = vmatpush1.msra.mxu0 0.0
    %101 = vmatprep.subr.mxu0 0.0
    %102 = vmatpush1.msra.mxu0 0.0
    %103 = vmatprep.subr.mxu0 0.0
    %104 = vmatpush1.msra.mxu0 0.0
    %105 = vmatprep.subr.mxu0 0.0
    %106 = vmatpush1.msra.mxu0 0.0
    %107 = vmatprep.subr.mxu0 0.0
    %108 = vmatpush1.msra.mxu0 0.0
    %109 = vmatprep.subr.mxu0 0.0
    %110 = vmatpush1.msra.mxu0 0.0
    %111 = vmatprep.subr.mxu0 0.0
    %112 = vmatpush1.msra.mxu0 0.0
    %113 = vmatprep.subr.mxu0 0.0
    %114 = vmatpush1.msra.mxu0 0.0
    %115 = vmatprep.subr.mxu0 0.0
    %116 = vmatpush1.msra.mxu0 0.0
    %117 = vmatprep.subr.mxu0 0.0
    %118 = vmatpush1.msra.mxu0 0.0
    %119 = vmatprep.subr.mxu0 0.0
    %120 = vmatpush1.msra.mxu0 0.0
    %121 = vmatprep.subr.mxu0 0.0
    %122 = vmatpush1.msra.mxu0 0.0
    %123 = vmatprep.subr.mxu0 0.0
    %124 = vmatpush1.msra.mxu0 0.0
    %125 = vmatprep.subr.mxu0 0.0
    %126 = vmatpush1.msra.mxu0 0.0
    %127 = vmatprep.subr.mxu0 0.0
    %128 = vmatpush1.msra.mxu0 0.0
    %129 = vmatprep.subr.mxu0 0.0
    %130 = vmatpush1.msra.mxu0 0.0
    %131 = vmatprep.subr.mxu0 0.0
    %132 = vmatpush1.msra.mxu0 0.0
    %133 = vmatprep.mubr.f32.mxu0 0.0
    %134 = vmatmul.mubr.f32.gmra.mrb[0].mxu0 %v67
    %v135 = vpop.f32.mrb[0].mxu0
    %v136 = vadd.f32 0.0, %v135
    %v137 = vpop.f32.mrb[0].mxu0
    %138 = vdwg.mxu0
    %vm139 = vcmask 523264
    %v140 = vsel %vm139, %v136, 0.0
    %v141 = vrot.slane %v140, 4
    %v142 = vadd.f32 %v140, %v141
    %v143 = vrot.slane %v142, 2
    %v144 = vadd.f32 %v142, %v143
    %v145 = vrot.slane %v144, 1
    %v146 = vadd.f32 %v144, %v145
    %v147 = vrcp.pop 8.0
    %v148 = vmul.f32 %v146, %v147
    %v149 = vmul.f32 %v136, %v136
    %v150 = vsel %vm139, %v149, 0.0
    %v151 = vrot.slane %v150, 4
    %v152 = vadd.f32 %v150, %v151
    %v153 = vrot.slane %v152, 2
    %v154 = vadd.f32 %v152, %v153
    %v155 = vrot.slane %v154, 1
    %v156 = vadd.f32 %v154, %v155
    %v157 = vmul.f32 %v156, %v147
    %v158 = vmul.f32 %v148, %v148
    %v159 = vsub.f32 %v157, %v158
    %v160 = vmax.f32 %v159, 0.0
    %v161 = vld [vmem:[%s2] sm:$0x3]
    %v162 = vadd.f32 %v160, 1e-05
    %v163 = vrsqrt.pop %v162
    %v164 = vmul.f32 %v161, %v163
    %v165 = vmul.f32 %v148, %v164
    %v167 = vrot.slane %v165, 7
    %v169 = vsub.f32 %v161, %v167
    %v170 = vlaneseq
    %v171 = vshrl.u32 %v170, 7
    %v172 = vsub.s32 0, %v171
    %v173 = vrot.slane %v164, %v172
    %v174 = vmul.f32 %v136, %v173
    %v175 = vlaneseq
    %v176 = vshrl.u32 %v175, 7
    %v177 = vsub.s32 1, %v176
    %v178 = vrot.slane %v169, %v177
    %v179 = vadd.f32 %v174, %v178
    %v180 = vmax.f32 %v179, 0.0
    %v181 = vld [vmem:[#allocation7] sm:$0xff]
    %v182 = vld [vmem:[#allocation7 + $0x8] sm:$0xff]
    %v183 = vld [vmem:[#allocation7 + $0x10] sm:$0xff]
    %v184 = vld [vmem:[#allocation7 + $0x18] sm:$0xff]
    %v185 = vld [vmem:[#allocation7 + $0x20] sm:$0xff]
    %v186 = vld [vmem:[#allocation7 + $0x28] sm:$0xff]
    %v187 = vld [vmem:[#allocation7 + $0x30] sm:$0xff]
    %v188 = vld [vmem:[#allocation7 + $0x38] sm:$0xff]
    %v189 = vld [vmem:[%s4] sm:$0x1]
    %v191 = vlaneseq
    %v192 = vshrl.u32 %v191, 7
    %v193 = vsub.s32 0, %v192
    %v194 = vrot.slane %v189, %v193
    %v197 = vsel %vm139, %v180, 0
    %199 = vmatprep.subr.mxu0 0.0
    %200 = vmatpush1.msra.mxu0 %v181
    %201 = vmatprep.subr.mxu0 0.0
    %202 = vmatpush1.msra.mxu0 %v182
    %203 = vmatprep.subr.mxu0 0.0
    %204 = vmatpush1.msra.mxu0 %v183
    %205 = vmatprep.subr.mxu0 0.0
    %206 = vmatpush1.msra.mxu0 %v184
    %207 = vmatprep.subr.mxu0 0.0
    %208 = vmatpush1.msra.mxu0 %v185
    %209 = vmatprep.subr.mxu0 0.0
    %210 = vmatpush1.msra.mxu0 %v186
    %211 = vmatprep.subr.mxu0 0.0
    %212 = vmatpush1.msra.mxu0 %v187
    %213 = vmatprep.subr.mxu0 0.0
    %214 = vmatpush1.msra.mxu0 %v188
    %215 = vmatprep.subr.mxu0 0.0
    %216 = vmatpush1.msra.mxu0 0.0
    %217 = vmatprep.subr.mxu0 0.0
    %218 = vmatpush1.msra.mxu0 0.0
    %219 = vmatprep.subr.mxu0 0.0
    %220 = vmatpush1.msra.mxu0 0.0
    %221 = vmatprep.subr.mxu0 0.0
    %222 = vmatpush1.msra.mxu0 0.0
    %223 = vmatprep.subr.mxu0 0.0
    %224 = vmatpush1.msra.mxu0 0.0
    %225 = vmatprep.subr.mxu0 0.0
    %226 = vmatpush1.msra.mxu0 0.0
    %227 = vmatprep.subr.mxu0 0.0
    %228 = vmatpush1.msra.mxu0 0.0
    %229 = vmatprep.subr.mxu0 0.0
    %230 = vmatpush1.msra.mxu0 0.0
    %231 = vmatprep.subr.mxu0 0.0
    %232 = vmatpush1.msra.mxu0 0.0
    %233 = vmatprep.subr.mxu0 0.0
    %234 = vmatpush1.msra.mxu0 0.0
    %235 = vmatprep.subr.mxu0 0.0
    %236 = vmatpush1.msra.mxu0 0.0
    %237 = vmatprep.subr.mxu0 0.0
    %238 = vmatpush1.msra.mxu0 0.0
    %239 = vmatprep.subr.mxu0 0.0
    %240 = vmatpush1.msra.mxu0 0.0
    %241 = vmatprep.subr.mxu0 0.0
    %242 = vmatpush1.msra.mxu0 0.0
    %243 = vmatprep.subr.mxu0 0.0
    %244 = vmatpush1.msra.mxu0 0.0
    %245 = vmatprep.subr.mxu0 0.0
    %246 = vmatpush1.msra.mxu0 0.0
    %247 = vmatprep.subr.mxu0 0.0
    %248 = vmatpush1.msra.mxu0 0.0
    %249 = vmatprep.subr.mxu0 0.0
    %250 = vmatpush1.msra.mxu0 0.0
    %251 = vmatprep.subr.mxu0 0.0
    %252 = vmatpush1.msra.mxu0 0.0
    %253 = vmatprep.subr.mxu0 0.0
    %254 = vmatpush1.msra.mxu0 0.0
    %255 = vmatprep.subr.mxu0 0.0
    %256 = vmatpush1.msra.mxu0 0.0
    %257 = vmatprep.subr.mxu0 0.0
    %258 = vmatpush1.msra.mxu0 0.0
    %259 = vmatprep.subr.mxu0 0.0
    %260 = vmatpush1.msra.mxu0 0.0
    %261 = vmatprep.subr.mxu0 0.0
    %262 = vmatpush1.msra.mxu0 0.0
    %263 = vmatprep.mubr.f32.mxu0 0.0
    %264 = vmatmul.mubr.f32.gmra.mrb[0].mxu0 %v197
    %v265 = vpop.f32.mrb[0].mxu0
    %v266 = vadd.f32 %v194, %v265
    %v267 = vpop.f32.mrb[0].mxu0
    %268 = vdwg.mxu0
    %269 = vst [vmem:[#allocation8] sm:$0xff] %v266
    // Predicated region
    $region34: #{tpu_custom_call.1} parent=1 // pred_check
      _
    $region35: #{tpu_custom_call.1} parent=1 // pred_check_branch
      %271 = sbr.rel (0) target = $region37
    $region36: #{tpu_custom_call.1} parent=1 // pred_region
      %s273 = ssub.s32 128, 128
      %274 = vsyncadd [#allocation4], %s273
      %s276 = sshll.u32 [#allocation8], 4
      %s277 = int_to_ptr.vmem [resolvable:$true] %s276
      %279 = dma.vmem_to_hbm [thread:$0]  %s277, 128, %s5, [#allocation4]
    $region37: #{tpu_custom_call.1} parent=1 // pred_fallthru
      _
    // Predicated region
    $region38: #{tpu_custom_call.1} parent=1 // pred_check
      _
    $region39: #{tpu_custom_call.1} parent=1 // pred_check_branch
      %281 = sbr.rel (0) target = $region41
    $region40: #{tpu_custom_call.1} parent=1 // pred_region
      %282 = dma.done [#allocation4], 128
    $region41: #{tpu_custom_call.1} parent=1 // pred_fallthru
      _
    %283 = vsyncpa [#allocation3], 1
    %284 = vsyncpa [#allocation6], 1
    %285 = vsyncpa [#allocation4], 1

</llo_original>
